<compile_context>
chip_gen: v5e
topology: v5e:2x2
jax: 0.10.0
libtpu: 0.0.40
codegen_flags: <defaults>
</compile_context>

<pallas_src>
import functools

import jax
import jax.numpy as jnp
from jax.experimental import pallas as pl
from jax.experimental.pallas import tpu as pltpu


def _round_up(x, m):
    return ((x + m - 1) // m) * m


def _tpu_vmem_and_cores():
    """(vmem_capacity_bytes, tensorcores sharing the grid). Defensive defaults: v5e/v6e."""
    cap = 128 << 20
    ncores = 1
    try:
        info = pltpu.get_tpu_info()
        c = getattr(info, "vmem_capacity_bytes", None)
        if c:
            cap = int(c)
        for attr in ("num_cores", "core_count", "num_tensorcores"):
            v = getattr(info, attr, None)
            if isinstance(v, int) and v > 0:
                ncores = v
                break
    except Exception:
        pass
    # v7x heuristic: 64 MiB VMEM per TC and 2 TCs per chip share the grid.
    if ncores == 1 and cap <= (96 << 20):
        ncores = 2
    return cap, ncores


# ---------------------------------------------------------------------------
# Kernel: one fused chunk of Linear(+activation) layers.
# ---------------------------------------------------------------------------
def _fused_mlp_kernel(*refs, activations, compute_dtype):
    """refs = (x_ref, w0, b0, w1, b1, ..., o_ref).

    x_ref: (TB, D0p) any float dtype (cast in-kernel), wi: (Din_p, Dout_p) compute dtype
    (pre-transposed), bi: (1, Dout_p) f32, o_ref: (TB, DLp).
    """
    x_ref = refs[0]
    o_ref = refs[-1]
    wb_refs = refs[1:-1]
    n_layers = len(activations)

    h = x_ref[...]
    if h.dtype != compute_dtype:
        h = h.astype(compute_dtype)
    for li, act in enumerate(activations):
        w = wb_refs[2 * li][...]        # (Din_p, Dout_p) — pre-transposed, no .T needed
        b = wb_refs[2 * li + 1][...]    # (1, Dout_p) f32
        # MXU matmul, f32 accumulation; bias + activation in f32 on VPU/EUP.
        y = jnp.dot(h, w, preferred_element_type=jnp.float32) + b
        if act == "relu":
            y = jnp.maximum(y, 0.0)
        elif act == "sigmoid":
            y = jax.nn.sigmoid(y)
        elif act is not None:
            raise ValueError(f"unsupported activation: {act}")
        if li + 1 < n_layers:
            h = y.astype(compute_dtype)
        else:
            o_ref[...] = y.astype(o_ref.dtype)


def _call_chunk(x_p, weights_p, biases_p, activations, *, tb, out_dtype, vmem_limit):
    """One fused pallas_call over a consecutive slice of layers."""
    bp, d0p = x_p.shape
    dlp = weights_p[-1].shape[1]
    grid = (bp // tb,)

    in_specs = [pl.BlockSpec((tb, d0p), lambda i: (i, 0))]
    args = [x_p]
    for w, b in zip(weights_p, biases_p):
        # Grid-invariant blocks: single buffer (a second buffer would be pure VMEM waste).
        in_specs.append(pl.BlockSpec(w.shape, lambda i: (0, 0),
                                     pipeline_mode=pl.Buffered(1)))
        in_specs.append(pl.BlockSpec(b.shape, lambda i: (0, 0),
                                     pipeline_mode=pl.Buffered(1)))
        args += [w, b]
    out_specs = pl.BlockSpec((tb, dlp), lambda i: (i, 0))

    flops = sum(2 * bp * w.shape[0] * w.shape[1] for w in weights_p)
    transcendentals = sum(bp * w.shape[1]
                          for w, a in zip(weights_p, activations) if a == "sigmoid")
    bytes_accessed = (
        x_p.size * x_p.dtype.itemsize
        + sum(w.size * w.dtype.itemsize + b.size * b.dtype.itemsize
              for w, b in zip(weights_p, biases_p))
        + bp * dlp * jnp.dtype(out_dtype).itemsize)

    kernel = functools.partial(_fused_mlp_kernel,
                               activations=tuple(activations),
                               compute_dtype=weights_p[0].dtype)
    return pl.pallas_call(
        kernel,
        out_shape=jax.ShapeDtypeStruct((bp, dlp), out_dtype),
        grid=grid,
        in_specs=in_specs,
        out_specs=out_specs,
        compiler_params=pltpu.CompilerParams(
            dimension_semantics=("parallel",),
            vmem_limit_bytes=int(vmem_limit),
        ),
        cost_estimate=pl.CostEstimate(
            flops=int(flops),
            transcendentals=int(transcendentals),
            bytes_accessed=int(bytes_accessed),
        ),
    )(*args)


def fused_mlp_forward(x, weights_p, biases_p, *, chunks, activations,
                      in_features, out_features, compute_dtype, out_dtype,
                      vmem_capacity, num_cores, tb_cap):
    """Run the fused MLP as one (or a few) pallas_calls.

    weights_p[i]: (Din_p, Dout_p) compute dtype (pre-transposed, zero-padded);
    biases_p[i]:  (1, Dout_p) f32; chunks: static tuple of (lo, hi) layer ranges.
    """
    B, din = x.shape
    assert din == in_features
    d0p = weights_p[0].shape[0]
    dims_p = [d0p] + [w.shape[1] for w in weights_p]
    dlp = dims_p[-1]
    max_dp = max(dims_p)
    c_itemsize = jnp.dtype(compute_dtype).itemsize

    def _wb_bytes(lo, hi):
        return sum(weights_p[i].size * weights_p[i].dtype.itemsize
                   + biases_p[i].size * biases_p[i].dtype.itemsize
                   for i in range(lo, hi))

    max_chunk_wb = max(_wb_bytes(lo, hi) for lo, hi in chunks)
    budget = int(0.75 * vmem_capacity)

    # ---- batch tiling -------------------------------------------------------
    bp = _round_up(max(B, 1), 8)
    tb = min(bp, tb_cap)
    # On multi-TC chips (v7x) make sure there are >=2 grid steps when batch permits,
    # so the "parallel" grid axis actually shards across TensorCores.
    if num_cores > 1 and bp >= 8 * num_cores:
        tb = min(tb, _round_up(pl.cdiv(bp, num_cores), 8))

    def _tile_bytes(t):
        # double-buffered x tile + output tile, plus ~2 live f32 intermediates.
        return (2 * t * d0p * 4
                + 2 * t * dlp * jnp.dtype(out_dtype).itemsize
                + 2 * t * max_dp * 4)

    while tb > 8 and max_chunk_wb + _tile_bytes(tb) + (2 << 20) > budget:
        tb = _round_up(max(tb // 2, 8), 8)
    bp = _round_up(bp, tb)

    # ---- input: skip the wrapper-side pad/cast pass when layout already matches ----
    if din == d0p and B == bp:
        x_p = x  # kernel casts to compute dtype; no extra HBM pass over x.
    else:
        x_p = jnp.zeros((bp, d0p), compute_dtype).at[:B, :din].set(
            x.astype(compute_dtype))

    # ---- run chunks ---------------------------------------------------------
    h = x_p
    n_layers = len(weights_p)
    for lo, hi in chunks:
        is_last = hi == n_layers
        chunk_out_dtype = out_dtype if is_last else compute_dtype
        dims_chunk = [weights_p[lo].shape[0]] + [weights_p[i].shape[1] for i in range(lo, hi)]
        vmem_needed = (
            _wb_bytes(lo, hi)                                            # resident, 1x (Buffered(1))
            + 2 * tb * dims_chunk[0] * h.dtype.itemsize                  # x tile, double-buffered
            + 2 * tb * dims_chunk[-1] * jnp.dtype(chunk_out_dtype).itemsize  # out tile
            + 2 * tb * max(dims_chunk) * 4)                              # live f32 intermediates
        # Generation-aware limit: ~0.75x capacity, never clamped below vmem_needed.
        vmem_limit = min(max(vmem_needed + (4 << 20), 16 << 20), budget)
        vmem_limit = max(vmem_limit, min(vmem_needed + (1 << 20), vmem_capacity))
        vmem_limit = min(vmem_limit, vmem_capacity)

        h = _call_chunk(h, tuple(weights_p[lo:hi]), tuple(biases_p[lo:hi]),
                        tuple(activations[lo:hi]),
                        tb=tb, out_dtype=chunk_out_dtype, vmem_limit=vmem_limit)

    # Slice off batch/feature padding (padded cols of the final sigmoid read 0.5).
    return h[:B, :out_features]


class SimpleMLP:
    """JAX/Pallas port of the PyTorch SimpleMLP.

    dimsList: [d0, d1, ..., dn]; layer i is Linear(d_i, d_{i+1}).
    activation: list of "relu" / "sigmoid" / None; default = ReLU on hidden layers,
                Sigmoid on the last (matches the PyTorch module).
    """

    def __init__(self, dimsList, activation=None, name="SimpleMLP", key=None,
                 compute_dtype=jnp.bfloat16, out_dtype=jnp.float32):
        if activation is None:
            activation = ["relu"] * (len(dimsList) - 2) + ["sigmoid"]
        assert len(dimsList) == len(activation) + 1
        self.activation = list(activation)
        self.name = name
        self.dims = list(dimsList)
        self.compute_dtype = compute_dtype
        self.out_dtype = out_dtype
        if key is None:
            key = jax.random.PRNGKey(0)

        vmem_capacity, num_cores = _tpu_vmem_and_cores()
        # Bigger tiles amortize per-step overhead; keep 256 on v7x's halved VMEM.
        tb_cap = 512 if vmem_capacity > (96 << 20) else 256

        dims_p = [_round_up(d, 128) for d in dimsList]

        self.params = []        # original PyTorch-layout (Dout, Din) f32 params
        weights_p, biases_p = [], []
        for i in range(len(self.activation)):
            din, dout = dimsList[i], dimsList[i + 1]
            key, kw, kb = jax.random.split(key, 3)
            # nn.Linear default init: U(-1/sqrt(din), 1/sqrt(din)).
            bound = 1.0 / float(jnp.sqrt(jnp.float32(din)))
            w = jax.random.uniform(kw, (dout, din), jnp.float32, -bound, bound)
            b = jax.random.uniform(kb, (dout,), jnp.float32, -bound, bound)
            self.params.append((w, b))

            # Pre-transposed, lane-padded, bf16 weights; padded entries are zero so they
            # contribute nothing to real columns.
            din_p, dout_p = dims_p[i], dims_p[i + 1]
            w_p = jnp.zeros((din_p, dout_p), compute_dtype)
            w_p = w_p.at[:din, :dout].set(w.T.astype(compute_dtype))
            b_p = jnp.zeros((1, dout_p), jnp.float32).at[0, :dout].set(b)
            weights_p.append(w_p)
            biases_p.append(b_p)

        # Greedy chunking so each fused call's resident weights fit ~0.5x VMEM.
        resident_budget = max(int(0.5 * vmem_capacity), 8 << 20)
        chunks, lo, acc = [], 0, 0
        for i, (w, b) in enumerate(zip(weights_p, biases_p)):
            wb = w.size * w.dtype.itemsize + b.size * b.dtype.itemsize
            if acc and acc + wb > resident_budget:
                chunks.append((lo, i))
                lo, acc = i, 0
            acc += wb
        chunks.append((lo, len(weights_p)))

        self._weights_p = tuple(weights_p)
        self._biases_p = tuple(biases_p)
        self._forward = jax.jit(
            functools.partial(
                fused_mlp_forward,
                chunks=tuple(chunks),
                activations=tuple(self.activation),
                in_features=dimsList[0],
                out_features=dimsList[-1],
                compute_dtype=compute_dtype,
                out_dtype=out_dtype,
                vmem_capacity=vmem_capacity,
                num_cores=num_cores,
                tb_cap=tb_cap,
            )
        )

    def __call__(self, x):
        return self._forward(x, self._weights_p, self._biases_p)


if __name__ == "__main__":
    key = jax.random.PRNGKey(0)
    kx, kp = jax.random.split(key)

    batch = 8
    dims = [16, 32, 32, 8]  # 3 Linear layers: ReLU, ReLU, Sigmoid

    x = jax.random.normal(kx, (batch, dims[0]), jnp.float32)
    mlp = SimpleMLP(dims, key=kp)

    out = jax.block_until_ready(mlp(x))

    # Pure-JAX reference mirroring the kernel numerics (bf16 matmul, f32 accum,
    # f32 bias + activation).
    cdt = mlp.compute_dtype
    h = x
    for (w, b), act in zip(mlp.params, mlp.activation):
        y = jnp.dot(h.astype(cdt), w.T.astype(cdt),
                    preferred_element_type=jnp.float32) + b
        if act == "relu":
            y = jnp.maximum(y, 0.0)
        elif act == "sigmoid":
            y = jax.nn.sigmoid(y)
        h = y
    ref = h

    assert out.shape == (batch, dims[-1])
    assert out.dtype == jnp.float32
    err = float(jnp.max(jnp.abs(out - ref)))
    assert jnp.allclose(out, ref, atol=1e-3, rtol=1e-3), f"max abs err = {err}"

    print("KERNEL_OK")
</pallas_src>

<mosaic_0001>
module attributes {stable_mosaic.version = 11 : i64} {
  func.func @_fused_mlp_kernel(%arg0: i32, %arg1: memref<8x128xbf16, #tpu.memory_space<vmem>>, %arg2: memref<128x128xbf16, #tpu.memory_space<vmem>>, %arg3: memref<1x128xf32, #tpu.memory_space<vmem>>, %arg4: memref<128x128xbf16, #tpu.memory_space<vmem>>, %arg5: memref<1x128xf32, #tpu.memory_space<vmem>>, %arg6: memref<128x128xbf16, #tpu.memory_space<vmem>>, %arg7: memref<1x128xf32, #tpu.memory_space<vmem>>, %arg8: memref<8x128xf32, #tpu.memory_space<vmem>>) attributes {dimension_semantics = [#tpu.dimension_semantics<parallel>], iteration_bounds = array<i64: 1>, scalar_prefetch = 0 : i64, scratch_operands = 0 : i64, tpu.core_type = #tpu.core_type<tc>, window_params = [{transform_indices = @transform_0, window_bounds = array<i64: 8, 128>}, {pipeline_mode = #tpu.pipeline_mode<synchronous>, transform_indices = @transform_1, window_bounds = array<i64: 128, 128>}, {pipeline_mode = #tpu.pipeline_mode<synchronous>, transform_indices = @transform_2, window_bounds = array<i64: 1, 128>}, {pipeline_mode = #tpu.pipeline_mode<synchronous>, transform_indices = @transform_3, window_bounds = array<i64: 128, 128>}, {pipeline_mode = #tpu.pipeline_mode<synchronous>, transform_indices = @transform_4, window_bounds = array<i64: 1, 128>}, {pipeline_mode = #tpu.pipeline_mode<synchronous>, transform_indices = @transform_5, window_bounds = array<i64: 128, 128>}, {pipeline_mode = #tpu.pipeline_mode<synchronous>, transform_indices = @transform_6, window_bounds = array<i64: 1, 128>}, {transform_indices = @transform_7, window_bounds = array<i64: 8, 128>}]} {
    %c0 = arith.constant 0 : index
    %c0_0 = arith.constant 0 : index
    %0 = vector.load %arg1[%c0, %c0_0] : memref<8x128xbf16, #tpu.memory_space<vmem>>, vector<8x128xbf16>
    %c0_1 = arith.constant 0 : index
    %c0_2 = arith.constant 0 : index
    %1 = vector.load %arg2[%c0_1, %c0_2] : memref<128x128xbf16, #tpu.memory_space<vmem>>, vector<128x128xbf16>
    %c0_3 = arith.constant 0 : index
    %c0_4 = arith.constant 0 : index
    %2 = vector.load %arg3[%c0_3, %c0_4] : memref<1x128xf32, #tpu.memory_space<vmem>>, vector<1x128xf32>
    %cst = arith.constant dense<0.000000e+00> : vector<8x128xf32>
    %3 = tpu.matmul %0, %1, %cst {dimension_numbers = #tpu.dot_dimension_numbers<[1], [0], [0], [1], [0, 0, 1, 1], [], []>} : vector<8x128xbf16>, vector<128x128xbf16>, vector<8x128xf32> -> vector<8x128xf32>
    %4 = vector.broadcast %2 : vector<1x128xf32> to vector<8x128xf32>
    %5 = arith.addf %3, %4 : vector<8x128xf32>
    %cst_5 = arith.constant 0.000000e+00 : f32
    %6 = vector.broadcast %cst_5 : f32 to vector<8x128xf32>
    %7 = arith.maximumf %5, %6 : vector<8x128xf32>
    %8 = arith.truncf %7 : vector<8x128xf32> to vector<8x128xbf16>
    %c0_6 = arith.constant 0 : index
    %c0_7 = arith.constant 0 : index
    %9 = vector.load %arg4[%c0_6, %c0_7] : memref<128x128xbf16, #tpu.memory_space<vmem>>, vector<128x128xbf16>
    %c0_8 = arith.constant 0 : index
    %c0_9 = arith.constant 0 : index
    %10 = vector.load %arg5[%c0_8, %c0_9] : memref<1x128xf32, #tpu.memory_space<vmem>>, vector<1x128xf32>
    %cst_10 = arith.constant dense<0.000000e+00> : vector<8x128xf32>
    %11 = tpu.matmul %8, %9, %cst_10 {dimension_numbers = #tpu.dot_dimension_numbers<[1], [0], [0], [1], [0, 0, 1, 1], [], []>} : vector<8x128xbf16>, vector<128x128xbf16>, vector<8x128xf32> -> vector<8x128xf32>
    %12 = vector.broadcast %10 : vector<1x128xf32> to vector<8x128xf32>
    %13 = arith.addf %11, %12 : vector<8x128xf32>
    %cst_11 = arith.constant 0.000000e+00 : f32
    %14 = vector.broadcast %cst_11 : f32 to vector<8x128xf32>
    %15 = arith.maximumf %13, %14 : vector<8x128xf32>
    %16 = arith.truncf %15 : vector<8x128xf32> to vector<8x128xbf16>
    %c0_12 = arith.constant 0 : index
    %c0_13 = arith.constant 0 : index
    %17 = vector.load %arg6[%c0_12, %c0_13] : memref<128x128xbf16, #tpu.memory_space<vmem>>, vector<128x128xbf16>
    %c0_14 = arith.constant 0 : index
    %c0_15 = arith.constant 0 : index
    %18 = vector.load %arg7[%c0_14, %c0_15] : memref<1x128xf32, #tpu.memory_space<vmem>>, vector<1x128xf32>
    %cst_16 = arith.constant dense<0.000000e+00> : vector<8x128xf32>
    %19 = tpu.matmul %16, %17, %cst_16 {dimension_numbers = #tpu.dot_dimension_numbers<[1], [0], [0], [1], [0, 0, 1, 1], [], []>} : vector<8x128xbf16>, vector<128x128xbf16>, vector<8x128xf32> -> vector<8x128xf32>
    %20 = vector.broadcast %18 : vector<1x128xf32> to vector<8x128xf32>
    %21 = arith.addf %19, %20 : vector<8x128xf32>
    %22 = arith.negf %21 : vector<8x128xf32>
    %23 = math.exp %22 : vector<8x128xf32>
    %cst_17 = arith.constant 1.000000e+00 : f32
    %24 = vector.broadcast %cst_17 : f32 to vector<8x128xf32>
    %25 = arith.addf %24, %23 : vector<8x128xf32>
    %26 = arith.divf %24, %25 : vector<8x128xf32>
    %c0_18 = arith.constant 0 : index
    %c0_19 = arith.constant 0 : index
    %27 = vector.load %arg8[%c0_18, %c0_19] : memref<8x128xf32, #tpu.memory_space<vmem>>, vector<8x128xf32>
    tpu.vector_store %arg8[%c0_18, %c0_19], %26 {strides = array<i32>} : memref<8x128xf32, #tpu.memory_space<vmem>>, vector<8x128xf32>,
    return
  }
  func.func @transform_0(%arg0: i32) -> (i32, i32) {
    %c0_i32 = arith.constant 0 : i32
    %c0_i32_0 = arith.constant 0 : i32
    return %arg0, %c0_i32 : i32, i32
  }
  func.func @transform_1(%arg0: i32) -> (i32, i32) {
    %c0_i32 = arith.constant 0 : i32
    %c0_i32_0 = arith.constant 0 : i32
    %c0_i32_1 = arith.constant 0 : i32
    return %c0_i32, %c0_i32_0 : i32, i32
  }
  func.func @transform_2(%arg0: i32) -> (i32, i32) {
    %c0_i32 = arith.constant 0 : i32
    %c0_i32_0 = arith.constant 0 : i32
    %c0_i32_1 = arith.constant 0 : i32
    return %c0_i32, %c0_i32_0 : i32, i32
  }
  func.func @transform_3(%arg0: i32) -> (i32, i32) {
    %c0_i32 = arith.constant 0 : i32
    %c0_i32_0 = arith.constant 0 : i32
    %c0_i32_1 = arith.constant 0 : i32
    return %c0_i32, %c0_i32_0 : i32, i32
  }
  func.func @transform_4(%arg0: i32) -> (i32, i32) {
    %c0_i32 = arith.constant 0 : i32
    %c0_i32_0 = arith.constant 0 : i32
    %c0_i32_1 = arith.constant 0 : i32
    return %c0_i32, %c0_i32_0 : i32, i32
  }
  func.func @transform_5(%arg0: i32) -> (i32, i32) {
    %c0_i32 = arith.constant 0 : i32
    %c0_i32_0 = arith.constant 0 : i32
    %c0_i32_1 = arith.constant 0 : i32
    return %c0_i32, %c0_i32_0 : i32, i32
  }
  func.func @transform_6(%arg0: i32) -> (i32, i32) {
    %c0_i32 = arith.constant 0 : i32
    %c0_i32_0 = arith.constant 0 : i32
    %c0_i32_1 = arith.constant 0 : i32
    return %c0_i32, %c0_i32_0 : i32, i32
  }
  func.func @transform_7(%arg0: i32) -> (i32, i32) {
    %c0_i32 = arith.constant 0 : i32
    %c0_i32_0 = arith.constant 0 : i32
    return %arg0, %c0_i32 : i32, i32
  }
}

</mosaic_0001>

<llo_original>
// kernel: fused_mlp_forward.1
$region0: #{fused_mlp_forward.1}
  #allocation0 [shape = 'u32[]', space=smem, size = 0x4, offset = 0x4, fixed_abs, tag = 'smem constant byte address 0x4 - core index']
  #allocation1 [shape = 'u32[72,128]{1,0:T(1,128)}', space=vmem, size = 0x9000, scoped, tag = 'internal scratch']
  %s0 = inlined_call_operand.vmem [shape: bf16[8,128], index: 0, kind: input, shape index: {}]
  %s1 = inlined_call_operand.hbm [shape: bf16[128,128], index: 1, kind: input, shape index: {}]
  %s2 = inlined_call_operand.vmem [shape: f32[1,128], index: 2, kind: input, shape index: {}]
  %s3 = inlined_call_operand.hbm [shape: bf16[128,128], index: 3, kind: input, shape index: {}]
  %s4 = inlined_call_operand.vmem [shape: f32[1,128], index: 4, kind: input, shape index: {}]
  %s5 = inlined_call_operand.hbm [shape: bf16[128,128], index: 5, kind: input, shape index: {}]
  %s6 = inlined_call_operand.vmem [shape: f32[1,128], index: 6, kind: input, shape index: {}]
  %s7 = inlined_call_operand.hbm [shape: f32[8,128], index: 7, kind: output, shape index: {}]
  %s8 = sld [smem:[#allocation0]]
  $region50: #{fused_mlp_forward.1} parent=0
    _
  %s10 = ssub.s32 1, %s8
  %s11 = scalar_select 0, %s10, %s8
  $region1: #{fused_mlp_forward.1} parent=0
    #allocation2 [shape = 'u8[32768]{0}', space=vmem, size = 0x8000, scoped, tag = 'input window, operand 1, single buffered']
    #allocation3 [shape = 's32[1]{0}', space=sflag, size = 0x4, scoped, tag = 'scoped memory for fused_mlp_forward.1']
    #allocation4 [shape = 's32[1]{0}', space=sflag, size = 0x4, scoped, tag = 'scoped memory for fused_mlp_forward.1']
    #allocation5 [shape = 'u8[32768]{0}', space=vmem, size = 0x8000, scoped, tag = 'input window, operand 3, single buffered']
    #allocation6 [shape = 's32[1]{0}', space=sflag, size = 0x4, scoped, tag = 'scoped memory for fused_mlp_forward.1']
    #allocation7 [shape = 'u8[32768]{0}', space=vmem, size = 0x8000, scoped, tag = 'input window, operand 5, single buffered']
    #allocation8 [shape = 'u8[4096]{0}', space=vmem, size = 0x1000, scoped, tag = 'output window, operand 0, single buffered']
    %12 = vsyncpa [#allocation3], 0
    %13 = vsyncpa [#allocation6], 0
    %14 = vsyncpa [#allocation4], 0
    // Predicated region
    $region2: #{fused_mlp_forward.1} parent=1 // pred_check
      _
    $region3: #{fused_mlp_forward.1} parent=1 // pred_check_branch
      %16 = sbr.rel (0) target = $region5
    $region4: #{fused_mlp_forward.1} parent=1 // pred_region
      _
    $region5: #{fused_mlp_forward.1} parent=1 // pred_fallthru
      _
    // Predicated region
    $region6: #{fused_mlp_forward.1} parent=1 // pred_check
      _
    $region7: #{fused_mlp_forward.1} parent=1 // pred_check_branch
      %18 = sbr.rel (0) target = $region9
    $region8: #{fused_mlp_forward.1} parent=1 // pred_region
      %20 = vsyncadd [#allocation3], 0
      %s21 = sshll.u32 %s1, 4
      %s22 = int_to_ptr.hbm [resolvable:$true] %s21
      %s23 = sshll.u32 [#allocation2], 4
      %s24 = int_to_ptr.vmem [resolvable:$true] %s23
      %29 = dma.hbm_to_vmem [thread:$0]  %s22, 1024, %s24, [#allocation3], 64, 64, 4
    $region9: #{fused_mlp_forward.1} parent=1 // pred_fallthru
      _
    // Predicated region
    $region10: #{fused_mlp_forward.1} parent=1 // pred_check
      _
    $region11: #{fused_mlp_forward.1} parent=1 // pred_check_branch
      %31 = sbr.rel (0) target = $region13
    $region12: #{fused_mlp_forward.1} parent=1 // pred_region
      _
    $region13: #{fused_mlp_forward.1} parent=1 // pred_fallthru
      _
    // Predicated region
    $region14: #{fused_mlp_forward.1} parent=1 // pred_check
      _
    $region15: #{fused_mlp_forward.1} parent=1 // pred_check_branch
      %33 = sbr.rel (0) target = $region17
    $region16: #{fused_mlp_forward.1} parent=1 // pred_region
      %35 = vsyncadd [#allocation6], 0
      %s36 = sshll.u32 %s3, 4
      %s37 = int_to_ptr.hbm [resolvable:$true] %s36
      %s38 = sshll.u32 [#allocation5], 4
      %s39 = int_to_ptr.vmem [resolvable:$true] %s38
      %44 = dma.hbm_to_vmem [thread:$0]  %s37, 1024, %s39, [#allocation6], 64, 64, 4
    $region17: #{fused_mlp_forward.1} parent=1 // pred_fallthru
      _
    // Predicated region
    $region18: #{fused_mlp_forward.1} parent=1 // pred_check
      _
    $region19: #{fused_mlp_forward.1} parent=1 // pred_check_branch
      %46 = sbr.rel (0) target = $region21
    $region20: #{fused_mlp_forward.1} parent=1 // pred_region
      _
    $region21: #{fused_mlp_forward.1} parent=1 // pred_fallthru
      _
    // Predicated region
    $region22: #{fused_mlp_forward.1} parent=1 // pred_check
      _
    $region23: #{fused_mlp_forward.1} parent=1 // pred_check_branch
      %48 = sbr.rel (0) target = $region25
    $region24: #{fused_mlp_forward.1} parent=1 // pred_region
      %50 = vsyncadd [#allocation6], 0
      %s51 = sshll.u32 %s5, 4
      %s52 = int_to_ptr.hbm [resolvable:$true] %s51
      %s53 = sshll.u32 [#allocation7], 4
      %s54 = int_to_ptr.vmem [resolvable:$true] %s53
      %59 = dma.hbm_to_vmem [thread:$0]  %s52, 1024, %s54, [#allocation6], 64, 64, 4
    $region25: #{fused_mlp_forward.1} parent=1 // pred_fallthru
      _
    // Predicated region
    $region26: #{fused_mlp_forward.1} parent=1 // pred_check
      _
    $region27: #{fused_mlp_forward.1} parent=1 // pred_check_branch
      %61 = sbr.rel (0) target = $region29
    $region28: #{fused_mlp_forward.1} parent=1 // pred_region
      _
    $region29: #{fused_mlp_forward.1} parent=1 // pred_fallthru
      _
    // Predicated region
    $region30: #{fused_mlp_forward.1} parent=1 // pred_check
      _
    $region31: #{fused_mlp_forward.1} parent=1 // pred_check_branch
      %63 = sbr.rel (0) target = $region33
    $region32: #{fused_mlp_forward.1} parent=1 // pred_region
      %65 = dma.done [#allocation3], 1024
    $region33: #{fused_mlp_forward.1} parent=1 // pred_fallthru
      _
    // Predicated region
    $region34: #{fused_mlp_forward.1} parent=1 // pred_check
      _
    $region35: #{fused_mlp_forward.1} parent=1 // pred_check_branch
      %67 = sbr.rel (0) target = $region37
    $region36: #{fused_mlp_forward.1} parent=1 // pred_region
      %69 = dma.done [#allocation6], 1024
    $region37: #{fused_mlp_forward.1} parent=1 // pred_fallthru
      _
    // Predicated region
    $region38: #{fused_mlp_forward.1} parent=1 // pred_check
      _
    $region39: #{fused_mlp_forward.1} parent=1 // pred_check_branch
      %71 = sbr.rel (0) target = $region41
    $region40: #{fused_mlp_forward.1} parent=1 // pred_region
      %73 = dma.done [#allocation6], 1024
    $region41: #{fused_mlp_forward.1} parent=1 // pred_fallthru
      _
    %v74 = vld [vmem:[%s0] sm:$0xf]
    %v75 = vld [vmem:[#allocation2] sm:$0xf]
    %v76 = vld [vmem:[#allocation2 + $0x4] sm:$0xf]
    %v77 = vld [vmem:[#allocation2 + $0x8] sm:$0xf]
    %v78 = vld [vmem:[#allocation2 + $0xc] sm:$0xf]
    %v79 = vld [vmem:[#allocation2 + $0x10] sm:$0xf]
    %v80 = vld [vmem:[#allocation2 + $0x14] sm:$0xf]
    %v81 = vld [vmem:[#allocation2 + $0x18] sm:$0xf]
    %v82 = vld [vmem:[#allocation2 + $0x1c] sm:$0xf]
    %v83 = vld [vmem:[#allocation2 + $0x20] sm:$0xf]
    %v84 = vld [vmem:[#allocation2 + $0x24] sm:$0xf]
    %v85 = vld [vmem:[#allocation2 + $0x28] sm:$0xf]
    %v86 = vld [vmem:[#allocation2 + $0x2c] sm:$0xf]
    %v87 = vld [vmem:[#allocation2 + $0x30] sm:$0xf]
    %v88 = vld [vmem:[#allocation2 + $0x34] sm:$0xf]
    %v89 = vld [vmem:[#allocation2 + $0x38] sm:$0xf]
    %v90 = vld [vmem:[#allocation2 + $0x3c] sm:$0xf]
    %v91 = vld [vmem:[%s2] sm:$0x1]
    %v93 = vperm.slane %v91, 0
    %v111 = vunpack.c.l.b16 %v75
    %v112 = vunpack.c.l.b16 %v76
    %v113 = vunpack.c.l.b16 %v77
    %v114 = vunpack.c.l.b16 %v78
    %v115 = vunpack.c.l.b16 %v79
    %v116 = vunpack.c.l.b16 %v80
    %v117 = vunpack.c.l.b16 %v81
    %v118 = vunpack.c.l.b16 %v82
    %v119 = vunpack.c.l.b16 %v83
    %v120 = vunpack.c.l.b16 %v84
    %v121 = vunpack.c.l.b16 %v85
    %v122 = vunpack.c.l.b16 %v86
    %v123 = vunpack.c.l.b16 %v87
    %v124 = vunpack.c.l.b16 %v88
    %v125 = vunpack.c.l.b16 %v89
    %v126 = vunpack.c.l.b16 %v90
    %v127 = vpack.c.b16 %v112, %v111
    %v128 = vpack.c.b16 %v114, %v113
    %v129 = vpack.c.b16 %v116, %v115
    %v130 = vpack.c.b16 %v118, %v117
    %v131 = vpack.c.b16 %v120, %v119
    %v132 = vpack.c.b16 %v122, %v121
    %v133 = vpack.c.b16 %v124, %v123
    %v134 = vpack.c.b16 %v126, %v125
    %143 = vmatpush.bf16.msra.mxu0 %v134
    %144 = vmatpush.bf16.msra.mxu0 %v133
    %145 = vmatpush.bf16.msra.mxu0 %v132
    %146 = vmatpush.bf16.msra.mxu0 %v131
    %147 = vmatpush.bf16.msra.mxu0 %v130
    %148 = vmatpush.bf16.msra.mxu0 %v129
    %149 = vmatpush.bf16.msra.mxu0 %v128
    %150 = vmatpush.bf16.msra.mxu0 %v127
    %151 = vmatmul.bf16.gmra.mxu0 %v74
    %v152 = vpop.f32.mrf.mxu0
    %v153 = vadd.f32 %v93, %v152
    %v154 = vpop.f32.mrf.mxu0
    %155 = vdwg.mxu0
    %v156 = vmax.f32 %v153, 0.0
    %v157 = vpack.c.bf16 %v156, %v156
    %v158 = vld [vmem:[#allocation5] sm:$0xf]
    %v159 = vld [vmem:[#allocation5 + $0x4] sm:$0xf]
    %v160 = vld [vmem:[#allocation5 + $0x8] sm:$0xf]
    %v161 = vld [vmem:[#allocation5 + $0xc] sm:$0xf]
    %v162 = vld [vmem:[#allocation5 + $0x10] sm:$0xf]
    %v163 = vld [vmem:[#allocation5 + $0x14] sm:$0xf]
    %v164 = vld [vmem:[#allocation5 + $0x18] sm:$0xf]
    %v165 = vld [vmem:[#allocation5 + $0x1c] sm:$0xf]
    %v166 = vld [vmem:[#allocation5 + $0x20] sm:$0xf]
    %v167 = vld [vmem:[#allocation5 + $0x24] sm:$0xf]
    %v168 = vld [vmem:[#allocation5 + $0x28] sm:$0xf]
    %v169 = vld [vmem:[#allocation5 + $0x2c] sm:$0xf]
    %v170 = vld [vmem:[#allocation5 + $0x30] sm:$0xf]
    %v171 = vld [vmem:[#allocation5 + $0x34] sm:$0xf]
    %v172 = vld [vmem:[#allocation5 + $0x38] sm:$0xf]
    %v173 = vld [vmem:[#allocation5 + $0x3c] sm:$0xf]
    %v174 = vld [vmem:[%s4] sm:$0x1]
    %v176 = vperm.slane %v174, 0
    %v194 = vunpack.c.l.b16 %v158
    %v195 = vunpack.c.l.b16 %v159
    %v196 = vunpack.c.l.b16 %v160
    %v197 = vunpack.c.l.b16 %v161
    %v198 = vunpack.c.l.b16 %v162
    %v199 = vunpack.c.l.b16 %v163
    %v200 = vunpack.c.l.b16 %v164
    %v201 = vunpack.c.l.b16 %v165
    %v202 = vunpack.c.l.b16 %v166
    %v203 = vunpack.c.l.b16 %v167
    %v204 = vunpack.c.l.b16 %v168
    %v205 = vunpack.c.l.b16 %v169
    %v206 = vunpack.c.l.b16 %v170
    %v207 = vunpack.c.l.b16 %v171
    %v208 = vunpack.c.l.b16 %v172
    %v209 = vunpack.c.l.b16 %v173
    %v210 = vpack.c.b16 %v195, %v194
    %v211 = vpack.c.b16 %v197, %v196
    %v212 = vpack.c.b16 %v199, %v198
    %v213 = vpack.c.b16 %v201, %v200
    %v214 = vpack.c.b16 %v203, %v202
    %v215 = vpack.c.b16 %v205, %v204
    %v216 = vpack.c.b16 %v207, %v206
    %v217 = vpack.c.b16 %v209, %v208
    %226 = vmatpush.bf16.msra.mxu0 %v217
    %227 = vmatpush.bf16.msra.mxu0 %v216
    %228 = vmatpush.bf16.msra.mxu0 %v215
    %229 = vmatpush.bf16.msra.mxu0 %v214
    %230 = vmatpush.bf16.msra.mxu0 %v213
    %231 = vmatpush.bf16.msra.mxu0 %v212
    %232 = vmatpush.bf16.msra.mxu0 %v211
    %233 = vmatpush.bf16.msra.mxu0 %v210
    %234 = vmatmul.bf16.gmra.mxu0 %v157
    %v235 = vpop.f32.mrf.mxu0
    %v236 = vadd.f32 %v176, %v235
    %v237 = vpop.f32.mrf.mxu0
    %238 = vdwg.mxu0
    %v239 = vmax.f32 %v236, 0.0
    %v240 = vpack.c.bf16 %v239, %v239
    %v241 = vld [vmem:[#allocation7] sm:$0xf]
    %v242 = vld [vmem:[#allocation7 + $0x4] sm:$0xf]
    %v243 = vld [vmem:[#allocation7 + $0x8] sm:$0xf]
    %v244 = vld [vmem:[#allocation7 + $0xc] sm:$0xf]
    %v245 = vld [vmem:[#allocation7 + $0x10] sm:$0xf]
    %v246 = vld [vmem:[#allocation7 + $0x14] sm:$0xf]
    %v247 = vld [vmem:[#allocation7 + $0x18] sm:$0xf]
    %v248 = vld [vmem:[#allocation7 + $0x1c] sm:$0xf]
    %v249 = vld [vmem:[#allocation7 + $0x20] sm:$0xf]
    %v250 = vld [vmem:[#allocation7 + $0x24] sm:$0xf]
    %v251 = vld [vmem:[#allocation7 + $0x28] sm:$0xf]
    %v252 = vld [vmem:[#allocation7 + $0x2c] sm:$0xf]
    %v253 = vld [vmem:[#allocation7 + $0x30] sm:$0xf]
    %v254 = vld [vmem:[#allocation7 + $0x34] sm:$0xf]
    %v255 = vld [vmem:[#allocation7 + $0x38] sm:$0xf]
    %v256 = vld [vmem:[#allocation7 + $0x3c] sm:$0xf]
    %v257 = vld [vmem:[%s6] sm:$0x1]
    %v259 = vperm.slane %v257, 0
    %v277 = vunpack.c.l.b16 %v241
    %v278 = vunpack.c.l.b16 %v242
    %v279 = vunpack.c.l.b16 %v243
    %v280 = vunpack.c.l.b16 %v244
    %v281 = vunpack.c.l.b16 %v245
    %v282 = vunpack.c.l.b16 %v246
    %v283 = vunpack.c.l.b16 %v247
    %v284 = vunpack.c.l.b16 %v248
    %v285 = vunpack.c.l.b16 %v249
    %v286 = vunpack.c.l.b16 %v250
    %v287 = vunpack.c.l.b16 %v251
    %v288 = vunpack.c.l.b16 %v252
    %v289 = vunpack.c.l.b16 %v253
    %v290 = vunpack.c.l.b16 %v254
    %v291 = vunpack.c.l.b16 %v255
    %v292 = vunpack.c.l.b16 %v256
    %v293 = vpack.c.b16 %v278, %v277
    %v294 = vpack.c.b16 %v280, %v279
    %v295 = vpack.c.b16 %v282, %v281
    %v296 = vpack.c.b16 %v284, %v283
    %v297 = vpack.c.b16 %v286, %v285
    %v298 = vpack.c.b16 %v288, %v287
    %v299 = vpack.c.b16 %v290, %v289
    %v300 = vpack.c.b16 %v292, %v291
    %309 = vmatpush.bf16.msra.mxu0 %v300
    %310 = vmatpush.bf16.msra.mxu0 %v299
    %311 = vmatpush.bf16.msra.mxu0 %v298
    %312 = vmatpush.bf16.msra.mxu0 %v297
    %313 = vmatpush.bf16.msra.mxu0 %v296
    %314 = vmatpush.bf16.msra.mxu0 %v295
    %315 = vmatpush.bf16.msra.mxu0 %v294
    %316 = vmatpush.bf16.msra.mxu0 %v293
    %317 = vmatmul.bf16.gmra.mxu0 %v240
    %v318 = vpop.f32.mrf.mxu0
    %v319 = vadd.f32 %v259, %v318
    %v320 = vpop.f32.mrf.mxu0
    %321 = vdwg.mxu0
    %v322 = vxor.u32 %v319, 2147483648
    %v323 = vmul.f32 %v322, 1.442695
    %v324 = vpow.pop %v323
    %v325 = vadd.f32 %v324, 1.0
    %v326 = vrcp.pop %v325
    %v327 = vmul.f32 %v325, %v326
    %v328 = vsub.f32 1.0, %v327
    %v329 = vmul.f32 %v326, %v328
    %v330 = vadd.f32 %v326, %v329
    %vm331 = vweird.f32 %v325
    %vm332 = vweird.f32 %v326
    %vm333 = vmor %vm331, %vm332
    %v334 = vsel %vm333, %v326, %v330
    %v335 = vand.u32 2147483647, %v325
    %vm336 = vcmp.eq.f32.partialorder %v335, 8.507059e+37
    %v337 = vand.u32 %v325, 2147483648
    %v338 = vor.u32 1.1754944e-38, %v337
    %v339 = vsel %vm336, %v338, %v334
    %v340 = vmul.f32 1.0, %v339
    %341 = vst [vmem:[#allocation8] sm:$0xff] %v340
    // Predicated region
    $region42: #{fused_mlp_forward.1} parent=1 // pred_check
      _
    $region43: #{fused_mlp_forward.1} parent=1 // pred_check_branch
      %343 = sbr.rel (0) target = $region45
    $region44: #{fused_mlp_forward.1} parent=1 // pred_region
      %345 = vsyncadd [#allocation4], 0
      %s347 = sshll.u32 [#allocation8], 4
      %s348 = int_to_ptr.vmem [resolvable:$true] %s347
      %s349 = sshll.u32 %s7, 4
      %s350 = int_to_ptr.hbm [resolvable:$true] %s349
      %352 = dma.vmem_to_hbm [thread:$0]  %s348, 128, %s350, [#allocation4]
    $region45: #{fused_mlp_forward.1} parent=1 // pred_fallthru
      _
    // Predicated region
    $region46: #{fused_mlp_forward.1} parent=1 // pred_check
      _
    $region47: #{fused_mlp_forward.1} parent=1 // pred_check_branch
      %354 = sbr.rel (0) target = $region49
    $region48: #{fused_mlp_forward.1} parent=1 // pred_region
      %356 = dma.done [#allocation4], 128
    $region49: #{fused_mlp_forward.1} parent=1 // pred_fallthru
      _
    %357 = vsyncpa [#allocation3], 1
    %358 = vsyncpa [#allocation6], 1
    %359 = vsyncpa [#allocation4], 1

</llo_original>
